<compile_context>
chip_gen: v5e
topology: v5e:2x2
jax: 0.10.0
libtpu: 0.0.40
codegen_flags: <defaults>
</compile_context>

<pallas_src>
import jax
import jax.numpy as jnp
from jax import lax
from jax.experimental import pallas as pl
from jax.experimental.pallas import tpu as pltpu


def _round_up(x, m):
    return (x + m - 1) // m * m


def _choose_tile(dim, target, gran):
    """Return (tile, padded_dim).

    tile is a multiple of `gran`, <= max(target, gran), and divides padded_dim
    (padded_dim >= dim). Prefers divisors of round_up(dim, gran) so that
    padding is zero for real GPT-2 widths; falls back to padding up to a
    target-sized tile if only pathologically small divisors exist.
    """
    dp = _round_up(dim, gran)
    target = max((target // gran) * gran, gran)
    if dp <= target:
        return dp, dp
    t = target
    while t > gran and dp % t != 0:
        t -= gran
    if 2 * t < target:
        # Only tiny divisors: keep a target-sized tile and pad instead.
        t = target
        dp = _round_up(dp, t)
    return t, dp


def _lora_kernel_fullk(x_ref, w_ref, b_ref, a_ref, bb_ref, o_ref, xa_ref):
    """Single K step: grid = (M tiles [parallel], N tiles [arbitrary]).

    x_ref : (bm, K)      bf16 input rows
    w_ref : (bn, K)      bf16 base weight tile, native (out_f, in_f) layout
    b_ref : (1, bn)      f32 base bias tile
    a_ref : (K, rank_p)  bf16 LoRA A (rank padded to 128 lanes)
    bb_ref: (rank_p, bn) f32 LoRA B, pre-scaled by alpha/rank
    o_ref : (bm, bn)
    xa_ref: (bm, rank_p) f32 scratch, persistent across the j sweep
    """
    @pl.when(pl.program_id(1) == 0)
    def _():
        # LoRA stage 1 is independent of the N tile: compute once per row tile
        # and reuse for every j (N axis must stay "arbitrary" for this).
        xa_ref[...] = jnp.dot(x_ref[...], a_ref[...],
                              preferred_element_type=jnp.float32)

    # Base: x (bm, K) contracted with W (bn, K) along in_features (native
    # layout, no wrapper-side transpose).
    acc = lax.dot_general(
        x_ref[...], w_ref[...],
        dimension_numbers=(((1,), (1,)), ((), ())),
        preferred_element_type=jnp.float32)
    lora = jnp.dot(xa_ref[...], bb_ref[...],
                   preferred_element_type=jnp.float32)
    o_ref[...] = (acc + lora + b_ref[...]).astype(o_ref.dtype)


def _lora_kernel_tiledk(x_ref, w_ref, b_ref, a_ref, bb_ref, o_ref,
                        acc_ref, xa_ref):
    """Tiled K fallback: grid = (M [parallel], N [arbitrary], K [arbitrary])."""
    j = pl.program_id(1)
    k = pl.program_id(2)
    nk = pl.num_programs(2)

    x = x_ref[...]
    part = lax.dot_general(
        x, w_ref[...],
        dimension_numbers=(((1,), (1,)), ((), ())),
        preferred_element_type=jnp.float32)

    @pl.when(k == 0)
    def _():
        acc_ref[...] = part          # direct assign: no zero-fill + RMW

    @pl.when(k > 0)
    def _():
        acc_ref[...] += part

    # LoRA stage 1 only while j == 0; the finished accumulator is reused for
    # every subsequent N tile of the same row block.
    @pl.when(jnp.logical_and(j == 0, k == 0))
    def _():
        xa_ref[...] = jnp.dot(x, a_ref[...],
                              preferred_element_type=jnp.float32)

    @pl.when(jnp.logical_and(j == 0, k > 0))
    def _():
        xa_ref[...] += jnp.dot(x, a_ref[...],
                               preferred_element_type=jnp.float32)

    @pl.when(k == nk - 1)
    def _():
        lora = jnp.dot(xa_ref[...], bb_ref[...],
                       preferred_element_type=jnp.float32)
        o_ref[...] = (acc_ref[...] + lora + b_ref[...]).astype(o_ref.dtype)


def linear_with_lora(x, w, b, a, bb, *, alpha=16,
                     compute_dtype=jnp.bfloat16,
                     block_m=512, block_n=1024, block_k=3072,
                     vmem_frac=0.72):
    """x: (batch, seq, in_f) -> (batch, seq, out_f).

    y = x @ W.T + b + (alpha/rank) * (x @ A @ B)
    """
    batch, seq, in_f = x.shape
    out_f, in_f_w = w.shape
    assert in_f_w == in_f, (w.shape, in_f)
    rank = a.shape[1]
    assert bb.shape == (rank, out_f), (bb.shape, rank, out_f)
    scaling = float(alpha) / float(rank)
    out_dtype = x.dtype

    M = batch * seq
    cdt = jnp.dtype(compute_dtype)
    # Sublane granularity of the compute dtype (f32: 8, bf16: 16, int8: 32).
    gm = 8 * (4 // cdt.itemsize)

    bm, Mp = _choose_tile(M, block_m, gm)
    bn, Np = _choose_tile(out_f, block_n, 128)
    bk, Kp = _choose_tile(in_f, block_k, 128)

    # v7x shards the 'parallel' M axis over 2 TensorCores: keep >= 2 blocks.
    if Mp // bm < 2 and Mp >= 2 * gm:
        bm = max(gm, (Mp // 2) // gm * gm)
        Mp = _round_up(Mp, bm)

    rank_p = _round_up(rank, 128)          # lane-dense LoRA intermediate

    # Cast to the MXU-native compute dtype and zero-pad to the tiled shapes
    # (zeros contribute nothing to contractions / bias, so padding is exact).
    x2 = x.reshape(M, in_f).astype(cdt)
    if (Mp, Kp) != (M, in_f):
        x2 = jnp.pad(x2, ((0, Mp - M), (0, Kp - in_f)))
    w_p = w.astype(cdt)                    # native (out_f, in_f) layout
    if (Np, Kp) != (out_f, in_f):
        w_p = jnp.pad(w_p, ((0, Np - out_f), (0, Kp - in_f)))
    b_p = b.astype(jnp.float32)
    if Np != out_f:
        b_p = jnp.pad(b_p, (0, Np - out_f))
    b_p = b_p.reshape(1, Np)
    a_p = jnp.pad(a.astype(cdt), ((0, Kp - in_f), (0, rank_p - rank)))
    # Fold alpha/rank into B in f32 (exact fold; B stays f32 — it is tiny and
    # is multiplied against the f32 x@A accumulator in the epilogue).
    bb_p = jnp.pad(bb.astype(jnp.float32) * scaling,
                   ((0, rank_p - rank), (0, Np - out_f)))

    grid_m, grid_n, grid_k = Mp // bm, Np // bn, Kp // bk
    single_k = (grid_k == 1)

    isz = cdt.itemsize
    osz = jnp.dtype(out_dtype).itemsize
    vmem_est = (2 * bm * bk * isz            # x (double-buffered)
                + 2 * bn * bk * isz          # W
                + 2 * bn * 4                 # bias
                + 2 * bk * rank_p * isz      # LoRA A
                + 2 * rank_p * bn * 4        # LoRA B
                + 2 * bm * bn * osz          # output
                + bm * rank_p * 4)           # x@A scratch
    if not single_k:
        vmem_est += bm * bn * 4              # base accumulator scratch

    # Generation-aware scoped-VMEM limit (v7x: 64 MiB/TC, v5e/v6e: 128 MiB).
    try:
        vmem_cap = int(pltpu.get_tpu_info().vmem_capacity_bytes)
    except Exception:  # pragma: no cover - conservative fallback
        vmem_cap = 64 * 1024 * 1024
    vmem_limit = int(min(max(2 * vmem_est, 32 * 1024 * 1024),
                         vmem_frac * vmem_cap))

    if single_k:
        kernel = _lora_kernel_fullk
        grid = (grid_m, grid_n)
        in_specs = [
            pl.BlockSpec((bm, bk), lambda i, j: (i, 0)),        # x rows
            pl.BlockSpec((bn, bk), lambda i, j: (j, 0)),        # W (native)
            pl.BlockSpec((1, bn), lambda i, j: (0, j)),         # bias
            pl.BlockSpec((bk, rank_p), lambda i, j: (0, 0)),    # LoRA A
            pl.BlockSpec((rank_p, bn), lambda i, j: (0, j)),    # LoRA B
        ]
        out_specs = pl.BlockSpec((bm, bn), lambda i, j: (i, j))
        scratch = [pltpu.VMEM((bm, rank_p), jnp.float32)]
        # N must be 'arbitrary': the x@A scratch computed at j==0 is reused
        # across the whole j sweep.
        dims = ("parallel", "arbitrary")
    else:
        kernel = _lora_kernel_tiledk
        grid = (grid_m, grid_n, grid_k)
        in_specs = [
            pl.BlockSpec((bm, bk), lambda i, j, k: (i, k)),
            pl.BlockSpec((bn, bk), lambda i, j, k: (j, k)),
            pl.BlockSpec((1, bn), lambda i, j, k: (0, j)),
            pl.BlockSpec((bk, rank_p), lambda i, j, k: (k, 0)),
            pl.BlockSpec((rank_p, bn), lambda i, j, k: (0, j)),
        ]
        out_specs = pl.BlockSpec((bm, bn), lambda i, j, k: (i, j))
        scratch = [pltpu.VMEM((bm, bn), jnp.float32),      # base accumulator
                   pltpu.VMEM((bm, rank_p), jnp.float32)]  # x@A accumulator
        dims = ("parallel", "arbitrary", "arbitrary")

    out2 = pl.pallas_call(
        kernel,
        out_shape=jax.ShapeDtypeStruct((Mp, Np), out_dtype),
        grid_spec=pltpu.PrefetchScalarGridSpec(
            num_scalar_prefetch=0,
            grid=grid,
            in_specs=in_specs,
            out_specs=out_specs,
            scratch_shapes=scratch,
        ),
        compiler_params=pltpu.CompilerParams(
            dimension_semantics=dims,
            vmem_limit_bytes=vmem_limit),
    )(x2, w_p, b_p, a_p, bb_p)

    if (Mp, Np) != (M, out_f):
        out2 = out2[:M, :out_f]
    return out2.reshape(batch, seq, out_f)


if __name__ == "__main__":
    # Small shapes consistent with the module: batch=2, seq=8, hidden=32 -> 64.
    batch, seq = 2, 8
    in_features, out_features = 32, 64
    rank, alpha = 16, 16

    key = jax.random.PRNGKey(0)
    kx, kw, kb, ka, kb2 = jax.random.split(key, 5)

    x = jax.random.normal(kx, (batch, seq, in_features), dtype=jnp.float32)

    # Frozen base nn.Linear parameters (deterministic synthetic init).
    w = jax.random.normal(kw, (out_features, in_features), dtype=jnp.float32) * 0.02
    b = jax.random.normal(kb, (out_features,), dtype=jnp.float32) * 0.02

    # LoRA params. Module init: A = randn*0.01, B = zeros. Use a small
    # non-zero B so the LoRA path is exercised numerically.
    a_lora = jax.random.normal(ka, (in_features, rank), dtype=jnp.float32) * 0.01
    b_lora = jax.random.normal(kb2, (rank, out_features), dtype=jnp.float32) * 0.01

    y = linear_with_lora(x, w, b, a_lora, b_lora, alpha=alpha)
    y = jax.block_until_ready(y)

    # Pure-JAX reference using the same bf16 rounding of x/W/A as the kernel's
    # compute dtype (accumulation in f32).
    xb = x.astype(jnp.bfloat16).astype(jnp.float32).reshape(-1, in_features)
    wb = w.astype(jnp.bfloat16).astype(jnp.float32)
    ab = a_lora.astype(jnp.bfloat16).astype(jnp.float32)
    scaling = alpha / rank
    y_ref = (xb @ wb.T + b + scaling * (xb @ ab @ b_lora)
             ).reshape(batch, seq, out_features).astype(x.dtype)

    assert y.shape == (batch, seq, out_features)
    assert jnp.allclose(y, y_ref, atol=2e-2, rtol=2e-2), "mismatch vs reference"
    print("KERNEL_OK")
</pallas_src>

<mosaic_0001>
module attributes {stable_mosaic.version = 11 : i64} {
  func.func @_lora_kernel_fullk(%arg0: i32, %arg1: i32, %arg2: memref<16x128xbf16, #tpu.memory_space<vmem>>, %arg3: memref<128x128xbf16, #tpu.memory_space<vmem>>, %arg4: memref<1x128xf32, #tpu.memory_space<vmem>>, %arg5: memref<128x128xbf16, #tpu.memory_space<vmem>>, %arg6: memref<128x128xf32, #tpu.memory_space<vmem>>, %arg7: memref<16x128xf32, #tpu.memory_space<vmem>>, %arg8: memref<16x128xf32, #tpu.memory_space<vmem>>) attributes {dimension_semantics = [#tpu.dimension_semantics<parallel>, #tpu.dimension_semantics<arbitrary>], iteration_bounds = array<i64: 1, 1>, scalar_prefetch = 0 : i64, scratch_operands = 1 : i64, tpu.core_type = #tpu.core_type<tc>, window_params = [{transform_indices = @transform_0, window_bounds = array<i64: 16, 128>}, {transform_indices = @transform_1, window_bounds = array<i64: 128, 128>}, {transform_indices = @transform_2, window_bounds = array<i64: 1, 128>}, {pipeline_mode = #tpu.pipeline_mode<synchronous>, transform_indices = @transform_3, window_bounds = array<i64: 128, 128>}, {transform_indices = @transform_4, window_bounds = array<i64: 128, 128>}, {transform_indices = @transform_5, window_bounds = array<i64: 16, 128>}]} {
    %c0_i32 = arith.constant 0 : i32
    %0 = arith.cmpi eq, %arg1, %c0_i32 : i32
    %1 = arith.extui %0 : i1 to i32
    %c0_i32_0 = arith.constant 0 : i32
    %2 = arith.cmpi ne, %1, %c0_i32_0 : i32
    scf.if %2 {
      %c0_13 = arith.constant 0 : index
      %c0_14 = arith.constant 0 : index
      %14 = vector.load %arg2[%c0_13, %c0_14] : memref<16x128xbf16, #tpu.memory_space<vmem>>, vector<16x128xbf16>
      %c0_15 = arith.constant 0 : index
      %c0_16 = arith.constant 0 : index
      %15 = vector.load %arg5[%c0_15, %c0_16] : memref<128x128xbf16, #tpu.memory_space<vmem>>, vector<128x128xbf16>
      %cst_17 = arith.constant dense<0.000000e+00> : vector<16x128xf32>
      %16 = tpu.matmul %14, %15, %cst_17 {dimension_numbers = #tpu.dot_dimension_numbers<[1], [0], [0], [1], [0, 0, 1, 1], [], []>} : vector<16x128xbf16>, vector<128x128xbf16>, vector<16x128xf32> -> vector<16x128xf32>
      %c0_18 = arith.constant 0 : index
      %c0_19 = arith.constant 0 : index
      %17 = vector.load %arg8[%c0_18, %c0_19] : memref<16x128xf32, #tpu.memory_space<vmem>>, vector<16x128xf32>
      tpu.vector_store %arg8[%c0_18, %c0_19], %16 {strides = array<i32>} : memref<16x128xf32, #tpu.memory_space<vmem>>, vector<16x128xf32>,
    } else {
    }
    %c0 = arith.constant 0 : index
    %c0_1 = arith.constant 0 : index
    %3 = vector.load %arg2[%c0, %c0_1] : memref<16x128xbf16, #tpu.memory_space<vmem>>, vector<16x128xbf16>
    %c0_2 = arith.constant 0 : index
    %c0_3 = arith.constant 0 : index
    %4 = vector.load %arg3[%c0_2, %c0_3] : memref<128x128xbf16, #tpu.memory_space<vmem>>, vector<128x128xbf16>
    %cst = arith.constant dense<0.000000e+00> : vector<16x128xf32>
    %5 = tpu.matmul %3, %4, %cst {dimension_numbers = #tpu.dot_dimension_numbers<[1], [1], [0], [0], [0, 0, 1, 0], [], []>} : vector<16x128xbf16>, vector<128x128xbf16>, vector<16x128xf32> -> vector<16x128xf32>
    %c0_4 = arith.constant 0 : index
    %c0_5 = arith.constant 0 : index
    %6 = vector.load %arg8[%c0_4, %c0_5] : memref<16x128xf32, #tpu.memory_space<vmem>>, vector<16x128xf32>
    %c0_6 = arith.constant 0 : index
    %c0_7 = arith.constant 0 : index
    %7 = vector.load %arg6[%c0_6, %c0_7] : memref<128x128xf32, #tpu.memory_space<vmem>>, vector<128x128xf32>
    %cst_8 = arith.constant dense<0.000000e+00> : vector<16x128xf32>
    %8 = tpu.matmul %6, %7, %cst_8 {dimension_numbers = #tpu.dot_dimension_numbers<[1], [0], [0], [1], [0, 0, 1, 1], [], []>} : vector<16x128xf32>, vector<128x128xf32>, vector<16x128xf32> -> vector<16x128xf32>
    %9 = arith.addf %5, %8 : vector<16x128xf32>
    %c0_9 = arith.constant 0 : index
    %c0_10 = arith.constant 0 : index
    %10 = vector.load %arg4[%c0_9, %c0_10] : memref<1x128xf32, #tpu.memory_space<vmem>>, vector<1x128xf32>
    %11 = vector.broadcast %10 : vector<1x128xf32> to vector<16x128xf32>
    %12 = arith.addf %9, %11 : vector<16x128xf32>
    %c0_11 = arith.constant 0 : index
    %c0_12 = arith.constant 0 : index
    %13 = vector.load %arg7[%c0_11, %c0_12] : memref<16x128xf32, #tpu.memory_space<vmem>>, vector<16x128xf32>
    tpu.vector_store %arg7[%c0_11, %c0_12], %12 {strides = array<i32>} : memref<16x128xf32, #tpu.memory_space<vmem>>, vector<16x128xf32>,
    return
  }
  func.func @transform_0(%arg0: i32, %arg1: i32) -> (i32, i32) {
    %c0_i32 = arith.constant 0 : i32
    %c0_i32_0 = arith.constant 0 : i32
    return %arg0, %c0_i32 : i32, i32
  }
  func.func @transform_1(%arg0: i32, %arg1: i32) -> (i32, i32) {
    %c0_i32 = arith.constant 0 : i32
    %c0_i32_0 = arith.constant 0 : i32
    return %arg1, %c0_i32 : i32, i32
  }
  func.func @transform_2(%arg0: i32, %arg1: i32) -> (i32, i32) {
    %c0_i32 = arith.constant 0 : i32
    %c0_i32_0 = arith.constant 0 : i32
    return %c0_i32, %arg1 : i32, i32
  }
  func.func @transform_3(%arg0: i32, %arg1: i32) -> (i32, i32) {
    %c0_i32 = arith.constant 0 : i32
    %c0_i32_0 = arith.constant 0 : i32
    %c0_i32_1 = arith.constant 0 : i32
    return %c0_i32, %c0_i32_0 : i32, i32
  }
  func.func @transform_4(%arg0: i32, %arg1: i32) -> (i32, i32) {
    %c0_i32 = arith.constant 0 : i32
    %c0_i32_0 = arith.constant 0 : i32
    return %c0_i32, %arg1 : i32, i32
  }
  func.func @transform_5(%arg0: i32, %arg1: i32) -> (i32, i32) {
    %c0_i32 = arith.constant 0 : i32
    return %arg0, %arg1 : i32, i32
  }
}

</mosaic_0001>

<llo_original>
// kernel: tpu_custom_call.1
$region0: #{tpu_custom_call.1}
  #allocation0 [shape = 'u32[]', space=smem, size = 0x4, offset = 0x4, fixed_abs, tag = 'smem constant byte address 0x4 - core index']
  #allocation1 [shape = 'u32[72,128]{1,0:T(1,128)}', space=vmem, size = 0x9000, scoped, tag = 'internal scratch']
  #allocation2 [shape = 'f32[16,128]{1,0:T(8,128)}', space=vmem, size = 0x2000, scoped, tag = 'scratch operand']
  %s0 = inlined_call_operand.hbm [shape: bf16[16,128], index: 0, kind: input, shape index: {}]
  %s1 = inlined_call_operand.hbm [shape: bf16[128,128], index: 1, kind: input, shape index: {}]
  %s2 = inlined_call_operand.vmem [shape: f32[1,128], index: 2, kind: input, shape index: {}]
  %s3 = inlined_call_operand.hbm [shape: bf16[128,128], index: 3, kind: input, shape index: {}]
  %s4 = inlined_call_operand.hbm [shape: f32[128,128], index: 4, kind: input, shape index: {}]
  %s5 = inlined_call_operand.hbm [shape: f32[16,128], index: 5, kind: output, shape index: {}]
  %s6 = sld [smem:[#allocation0]]
  $region50: #{tpu_custom_call.1} parent=0
    _
  %s8 = ssub.s32 1, %s6
  %s9 = scalar_select 0, %s8, %s6
  $region1: #{tpu_custom_call.1} parent=0
    #allocation3 [shape = 'u8[4096]{0}', space=vmem, size = 0x1000, scoped, tag = 'input window, operand 0, single buffered']
    #allocation4 [shape = 's32[1]{0}', space=sflag, size = 0x4, scoped, tag = 'scoped memory for tpu_custom_call.1']
    #allocation5 [shape = 's32[1]{0}', space=sflag, size = 0x4, scoped, tag = 'scoped memory for tpu_custom_call.1']
    #allocation6 [shape = 'u8[32768]{0}', space=vmem, size = 0x8000, scoped, tag = 'input window, operand 1, single buffered']
    #allocation7 [shape = 's32[1]{0}', space=sflag, size = 0x4, scoped, tag = 'scoped memory for tpu_custom_call.1']
    #allocation8 [shape = 'u8[32768]{0}', space=vmem, size = 0x8000, scoped, tag = 'input window, operand 3, single buffered']
    #allocation9 [shape = 'u8[65536]{0}', space=vmem, size = 0x10000, scoped, tag = 'input window, operand 4, single buffered']
    #allocation10 [shape = 's32[1]{0}', space=sflag, size = 0x4, scoped, tag = 'scoped memory for tpu_custom_call.1']
    #allocation11 [shape = 'u8[8192]{0}', space=vmem, size = 0x2000, scoped, tag = 'output window, operand 0, single buffered']
    %10 = vsyncpa [#allocation4], 0
    %11 = vsyncpa [#allocation7], 0
    %12 = vsyncpa [#allocation10], 0
    %13 = vsyncpa [#allocation5], 0
    // Predicated region
    $region2: #{tpu_custom_call.1} parent=1 // pred_check
      _
    $region3: #{tpu_custom_call.1} parent=1 // pred_check_branch
      %15 = sbr.rel (0) target = $region5
    $region4: #{tpu_custom_call.1} parent=1 // pred_region
      %17 = vsyncadd [#allocation4], 0
      %s18 = sshll.u32 %s0, 4
      %s19 = int_to_ptr.hbm [resolvable:$true] %s18
      %s20 = sshll.u32 [#allocation3], 4
      %s21 = int_to_ptr.vmem [resolvable:$true] %s20
      %26 = dma.hbm_to_vmem [thread:$0]  %s19, 128, %s21, [#allocation4], 64, 64, 4
    $region5: #{tpu_custom_call.1} parent=1 // pred_fallthru
      _
    // Predicated region
    $region6: #{tpu_custom_call.1} parent=1 // pred_check
      _
    $region7: #{tpu_custom_call.1} parent=1 // pred_check_branch
      %28 = sbr.rel (0) target = $region9
    $region8: #{tpu_custom_call.1} parent=1 // pred_region
      %30 = vsyncadd [#allocation7], 0
      %s31 = sshll.u32 %s1, 4
      %s32 = int_to_ptr.hbm [resolvable:$true] %s31
      %s33 = sshll.u32 [#allocation6], 4
      %s34 = int_to_ptr.vmem [resolvable:$true] %s33
      %39 = dma.hbm_to_vmem [thread:$0]  %s32, 1024, %s34, [#allocation7], 64, 64, 4
    $region9: #{tpu_custom_call.1} parent=1 // pred_fallthru
      _
    // Predicated region
    $region10: #{tpu_custom_call.1} parent=1 // pred_check
      _
    $region11: #{tpu_custom_call.1} parent=1 // pred_check_branch
      %41 = sbr.rel (0) target = $region13
    $region12: #{tpu_custom_call.1} parent=1 // pred_region
      _
    $region13: #{tpu_custom_call.1} parent=1 // pred_fallthru
      _
    // Predicated region
    $region14: #{tpu_custom_call.1} parent=1 // pred_check
      _
    $region15: #{tpu_custom_call.1} parent=1 // pred_check_branch
      %43 = sbr.rel (0) target = $region17
    $region16: #{tpu_custom_call.1} parent=1 // pred_region
      %45 = vsyncadd [#allocation7], 0
      %s46 = sshll.u32 %s3, 4
      %s47 = int_to_ptr.hbm [resolvable:$true] %s46
      %s48 = sshll.u32 [#allocation8], 4
      %s49 = int_to_ptr.vmem [resolvable:$true] %s48
      %54 = dma.hbm_to_vmem [thread:$0]  %s47, 1024, %s49, [#allocation7], 64, 64, 4
    $region17: #{tpu_custom_call.1} parent=1 // pred_fallthru
      _
    // Predicated region
    $region18: #{tpu_custom_call.1} parent=1 // pred_check
      _
    $region19: #{tpu_custom_call.1} parent=1 // pred_check_branch
      %56 = sbr.rel (0) target = $region21
    $region20: #{tpu_custom_call.1} parent=1 // pred_region
      %58 = vsyncadd [#allocation10], 0
      %s59 = sshll.u32 %s4, 4
      %s60 = int_to_ptr.hbm [resolvable:$true] %s59
      %s61 = sshll.u32 [#allocation9], 4
      %s62 = int_to_ptr.vmem [resolvable:$true] %s61
      %67 = dma.hbm_to_vmem [thread:$0]  %s60, 2048, %s62, [#allocation10], 128, 128, 8
    $region21: #{tpu_custom_call.1} parent=1 // pred_fallthru
      _
    // Predicated region
    $region22: #{tpu_custom_call.1} parent=1 // pred_check
      _
    $region23: #{tpu_custom_call.1} parent=1 // pred_check_branch
      %69 = sbr.rel (0) target = $region25
    $region24: #{tpu_custom_call.1} parent=1 // pred_region
      %71 = dma.done [#allocation4], 128
    $region25: #{tpu_custom_call.1} parent=1 // pred_fallthru
      _
    // Predicated region
    $region26: #{tpu_custom_call.1} parent=1 // pred_check
      _
    $region27: #{tpu_custom_call.1} parent=1 // pred_check_branch
      %73 = sbr.rel (0) target = $region29
    $region28: #{tpu_custom_call.1} parent=1 // pred_region
      %75 = dma.done [#allocation7], 1024
    $region29: #{tpu_custom_call.1} parent=1 // pred_fallthru
      _
    // Predicated region
    $region30: #{tpu_custom_call.1} parent=1 // pred_check
      _
    $region31: #{tpu_custom_call.1} parent=1 // pred_check_branch
      %77 = sbr.rel (0) target = $region33
    $region32: #{tpu_custom_call.1} parent=1 // pred_region
      %79 = dma.done [#allocation7], 1024
    $region33: #{tpu_custom_call.1} parent=1 // pred_fallthru
      _
    // Predicated region
    $region34: #{tpu_custom_call.1} parent=1 // pred_check
      _
    $region35: #{tpu_custom_call.1} parent=1 // pred_check_branch
      %81 = sbr.rel (0) target = $region37
    $region36: #{tpu_custom_call.1} parent=1 // pred_region
      %83 = dma.done [#allocation10], 2048
    $region37: #{tpu_custom_call.1} parent=1 // pred_fallthru
      _
    %p84 = scmp.eq.s32.totalorder 0, 0
    // Predicated region
    $region38: #{tpu_custom_call.1} parent=1 // pred_check
      %p85 = pneg %p84
    $region39: #{tpu_custom_call.1} parent=1 // pred_check_branch
      %87 = sbr.rel (%p85) target = $region41
    $region40: #{tpu_custom_call.1} parent=1 // pred_region
      %v88 = vld [vmem:[#allocation3] sm:$0xf]
      %v89 = vld [vmem:[#allocation3 + $0x4] sm:$0xf]
      %v90 = vld [vmem:[#allocation8] sm:$0xf]
      %v91 = vld [vmem:[#allocation8 + $0x4] sm:$0xf]
      %v92 = vld [vmem:[#allocation8 + $0x8] sm:$0xf]
      %v93 = vld [vmem:[#allocation8 + $0xc] sm:$0xf]
      %v94 = vld [vmem:[#allocation8 + $0x10] sm:$0xf]
      %v95 = vld [vmem:[#allocation8 + $0x14] sm:$0xf]
      %v96 = vld [vmem:[#allocation8 + $0x18] sm:$0xf]
      %v97 = vld [vmem:[#allocation8 + $0x1c] sm:$0xf]
      %v98 = vld [vmem:[#allocation8 + $0x20] sm:$0xf]
      %v99 = vld [vmem:[#allocation8 + $0x24] sm:$0xf]
      %v100 = vld [vmem:[#allocation8 + $0x28] sm:$0xf]
      %v101 = vld [vmem:[#allocation8 + $0x2c] sm:$0xf]
      %v102 = vld [vmem:[#allocation8 + $0x30] sm:$0xf]
      %v103 = vld [vmem:[#allocation8 + $0x34] sm:$0xf]
      %v104 = vld [vmem:[#allocation8 + $0x38] sm:$0xf]
      %v105 = vld [vmem:[#allocation8 + $0x3c] sm:$0xf]
      %v108 = vunpack.c.l.b16 %v88
      %v109 = vunpack.c.l.b16 %v89
      %v110 = vpack.c.b16 %v109, %v108
      %v128 = vunpack.c.l.b16 %v90
      %v129 = vunpack.c.l.b16 %v91
      %v130 = vunpack.c.l.b16 %v92
      %v131 = vunpack.c.l.b16 %v93
      %v132 = vunpack.c.l.b16 %v94
      %v133 = vunpack.c.l.b16 %v95
      %v134 = vunpack.c.l.b16 %v96
      %v135 = vunpack.c.l.b16 %v97
      %v136 = vunpack.c.l.b16 %v98
      %v137 = vunpack.c.l.b16 %v99
      %v138 = vunpack.c.l.b16 %v100
      %v139 = vunpack.c.l.b16 %v101
      %v140 = vunpack.c.l.b16 %v102
      %v141 = vunpack.c.l.b16 %v103
      %v142 = vunpack.c.l.b16 %v104
      %v143 = vunpack.c.l.b16 %v105
      %v144 = vpack.c.b16 %v129, %v128
      %v145 = vpack.c.b16 %v131, %v130
      %v146 = vpack.c.b16 %v133, %v132
      %v147 = vpack.c.b16 %v135, %v134
      %v148 = vpack.c.b16 %v137, %v136
      %v149 = vpack.c.b16 %v139, %v138
      %v150 = vpack.c.b16 %v141, %v140
      %v151 = vpack.c.b16 %v143, %v142
      %160 = vmatpush.bf16.msra.mxu0 %v151
      %161 = vmatpush.bf16.msra.mxu0 %v150
      %162 = vmatpush.bf16.msra.mxu0 %v149
      %163 = vmatpush.bf16.msra.mxu0 %v148
      %164 = vmatpush.bf16.msra.mxu0 %v147
      %165 = vmatpush.bf16.msra.mxu0 %v146
      %166 = vmatpush.bf16.msra.mxu0 %v145
      %167 = vmatpush.bf16.msra.mxu0 %v144
      %168 = vmatmul.bf16.gmra.mxu0 %v110
      %v169 = vpop.f32.mrf.mxu0
      %v170 = vadd.f32 0.0, %v169
      %v171 = vpop.f32.mrf.mxu0
      %v172 = vadd.f32 0.0, %v171
      %173 = vdwg.mxu0
      %174 = vst [vmem:[#allocation2] sm:$0xff] %v170
      %175 = vst [vmem:[#allocation2 + $0x8] sm:$0xff] %v172
    $region41: #{tpu_custom_call.1} parent=1 // pred_fallthru
      _
    %v176 = vld [vmem:[#allocation3] sm:$0xf]
    %v177 = vld [vmem:[#allocation3 + $0x4] sm:$0xf]
    %v178 = vld [vmem:[#allocation6] sm:$0xf]
    %v179 = vld [vmem:[#allocation6 + $0x4] sm:$0xf]
    %v180 = vld [vmem:[#allocation6 + $0x8] sm:$0xf]
    %v181 = vld [vmem:[#allocation6 + $0xc] sm:$0xf]
    %v182 = vld [vmem:[#allocation6 + $0x10] sm:$0xf]
    %v183 = vld [vmem:[#allocation6 + $0x14] sm:$0xf]
    %v184 = vld [vmem:[#allocation6 + $0x18] sm:$0xf]
    %v185 = vld [vmem:[#allocation6 + $0x1c] sm:$0xf]
    %v186 = vld [vmem:[#allocation6 + $0x20] sm:$0xf]
    %v187 = vld [vmem:[#allocation6 + $0x24] sm:$0xf]
    %v188 = vld [vmem:[#allocation6 + $0x28] sm:$0xf]
    %v189 = vld [vmem:[#allocation6 + $0x2c] sm:$0xf]
    %v190 = vld [vmem:[#allocation6 + $0x30] sm:$0xf]
    %v191 = vld [vmem:[#allocation6 + $0x34] sm:$0xf]
    %v192 = vld [vmem:[#allocation6 + $0x38] sm:$0xf]
    %v193 = vld [vmem:[#allocation6 + $0x3c] sm:$0xf]
    %v194 = vld [vmem:[#allocation2] sm:$0xff]
    %v195 = vld [vmem:[#allocation2 + $0x8] sm:$0xff]
    %v196 = vld [vmem:[#allocation9] sm:$0xff]
    %v197 = vld [vmem:[#allocation9 + $0x8] sm:$0xff]
    %v198 = vld [vmem:[#allocation9 + $0x10] sm:$0xff]
    %v199 = vld [vmem:[#allocation9 + $0x18] sm:$0xff]
    %v200 = vld [vmem:[#allocation9 + $0x20] sm:$0xff]
    %v201 = vld [vmem:[#allocation9 + $0x28] sm:$0xff]
    %v202 = vld [vmem:[#allocation9 + $0x30] sm:$0xff]
    %v203 = vld [vmem:[#allocation9 + $0x38] sm:$0xff]
    %v204 = vld [vmem:[#allocation9 + $0x40] sm:$0xff]
    %v205 = vld [vmem:[#allocation9 + $0x48] sm:$0xff]
    %v206 = vld [vmem:[#allocation9 + $0x50] sm:$0xff]
    %v207 = vld [vmem:[#allocation9 + $0x58] sm:$0xff]
    %v208 = vld [vmem:[#allocation9 + $0x60] sm:$0xff]
    %v209 = vld [vmem:[#allocation9 + $0x68] sm:$0xff]
    %v210 = vld [vmem:[#allocation9 + $0x70] sm:$0xff]
    %v211 = vld [vmem:[#allocation9 + $0x78] sm:$0xff]
    %212 = vmatpush.msra.mxu0 %v211
    %213 = vmatpush.msra.mxu0 %v210
    %214 = vmatpush.msra.mxu0 %v209
    %215 = vmatpush.msra.mxu0 %v208
    %216 = vmatpush.msra.mxu0 %v207
    %217 = vmatpush.msra.mxu0 %v206
    %218 = vmatpush.msra.mxu0 %v205
    %219 = vmatpush.msra.mxu0 %v204
    %220 = vmatpush.msra.mxu0 %v203
    %221 = vmatpush.msra.mxu0 %v202
    %222 = vmatpush.msra.mxu0 %v201
    %223 = vmatpush.msra.mxu0 %v200
    %224 = vmatpush.msra.mxu0 %v199
    %225 = vmatpush.msra.mxu0 %v198
    %226 = vmatpush.msra.mxu0 %v197
    %227 = vmatpush.msra.mxu0 %v196
    %228 = vmatmul.f32.gmra.mxu0 %v194
    %v229 = vpop.f32.mrf.mxu0
    %v230 = vadd.f32 0.0, %v229
    %231 = vmatmul.f32.gmra.mxu0 %v195
    %v232 = vpop.f32.mrf.mxu0
    %v233 = vadd.f32 0.0, %v232
    %234 = vdwg.mxu0
    %v237 = vunpack.c.l.b16 %v176
    %v238 = vunpack.c.l.b16 %v177
    %v239 = vpack.c.b16 %v238, %v237
    %v257 = vunpack.c.l.b16 %v178
    %v258 = vunpack.c.l.b16 %v179
    %v259 = vunpack.c.l.b16 %v180
    %v260 = vunpack.c.l.b16 %v181
    %v261 = vunpack.c.l.b16 %v182
    %v262 = vunpack.c.l.b16 %v183
    %v263 = vunpack.c.l.b16 %v184
    %v264 = vunpack.c.l.b16 %v185
    %v265 = vunpack.c.l.b16 %v186
    %v266 = vunpack.c.l.b16 %v187
    %v267 = vunpack.c.l.b16 %v188
    %v268 = vunpack.c.l.b16 %v189
    %v269 = vunpack.c.l.b16 %v190
    %v270 = vunpack.c.l.b16 %v191
    %v271 = vunpack.c.l.b16 %v192
    %v272 = vunpack.c.l.b16 %v193
    %v273 = vpack.c.b16 %v258, %v257
    %v274 = vpack.c.b16 %v260, %v259
    %v275 = vpack.c.b16 %v262, %v261
    %v276 = vpack.c.b16 %v264, %v263
    %v277 = vpack.c.b16 %v266, %v265
    %v278 = vpack.c.b16 %v268, %v267
    %v279 = vpack.c.b16 %v270, %v269
    %v280 = vpack.c.b16 %v272, %v271
    %289 = vmatpush.bf16.xpose.msra.mxu0 %v280
    %290 = vmatpush.bf16.xpose.msra.mxu0 %v279
    %291 = vmatpush.bf16.xpose.msra.mxu0 %v278
    %292 = vmatpush.bf16.xpose.msra.mxu0 %v277
    %293 = vmatpush.bf16.xpose.msra.mxu0 %v276
    %294 = vmatpush.bf16.xpose.msra.mxu0 %v275
    %295 = vmatpush.bf16.xpose.msra.mxu0 %v274
    %296 = vmatpush.bf16.xpose.msra.mxu0 %v273
    %297 = vmatmul.bf16.gmra.mxu0 %v239
    %v298 = vpop.f32.mrf.mxu0
    %v299 = vadd.f32 %v230, %v298
    %v300 = vpop.f32.mrf.mxu0
    %v301 = vadd.f32 %v233, %v300
    %302 = vdwg.mxu0
    %v303 = vld [vmem:[%s2] sm:$0x1]
    %v305 = vperm.slane %v303, 0
    %v307 = vadd.f32 %v299, %v305
    %v308 = vadd.f32 %v301, %v305
    %309 = vst [vmem:[#allocation11] sm:$0xff] %v307
    %310 = vst [vmem:[#allocation11 + $0x8] sm:$0xff] %v308
    // Predicated region
    $region42: #{tpu_custom_call.1} parent=1 // pred_check
      _
    $region43: #{tpu_custom_call.1} parent=1 // pred_check_branch
      %312 = sbr.rel (0) target = $region45
    $region44: #{tpu_custom_call.1} parent=1 // pred_region
      %314 = vsyncadd [#allocation5], 0
      %s315 = sshll.u32 [#allocation11], 4
      %s316 = int_to_ptr.vmem [resolvable:$true] %s315
      %s317 = sshll.u32 %s5, 4
      %s318 = int_to_ptr.hbm [resolvable:$true] %s317
      %323 = dma.vmem_to_hbm [thread:$0]  %s316, 256, %s318, [#allocation5], 128, 128, 8
    $region45: #{tpu_custom_call.1} parent=1 // pred_fallthru
      _
    // Predicated region
    $region46: #{tpu_custom_call.1} parent=1 // pred_check
      _
    $region47: #{tpu_custom_call.1} parent=1 // pred_check_branch
      %325 = sbr.rel (0) target = $region49
    $region48: #{tpu_custom_call.1} parent=1 // pred_region
      %327 = dma.done [#allocation5], 256
    $region49: #{tpu_custom_call.1} parent=1 // pred_fallthru
      _
    %328 = vsyncpa [#allocation4], 1
    %329 = vsyncpa [#allocation7], 1
    %330 = vsyncpa [#allocation10], 1
    %331 = vsyncpa [#allocation5], 1

</llo_original>
